<compile_context>
chip_gen: v6e
topology: v6e:2x2x1
jax: 0.10.0
libtpu: 0.0.40
codegen_flags: <defaults>
</compile_context>

<pallas_src>
import functools

import jax
import jax.numpy as jnp
from jax.experimental import pallas as pl
from jax.experimental.pallas import tpu as pltpu


def _round_up(x, m):
    return ((x + m - 1) // m) * m


def _fused_add_ln_kernel(*refs, eps, has_residual):
    # refs: (hs, [res], weight, bias, hs_out, res_out)
    if has_residual:
        hs_ref, res_ref, w_ref, b_ref, hs_out_ref, res_out_ref = refs
    else:
        hs_ref, w_ref, b_ref, hs_out_ref, res_out_ref = refs
        res_ref = None

    hs = hs_ref[...].astype(jnp.float32)
    res = hs if res_ref is None else res_ref[...].astype(jnp.float32) + hs
    res_out_ref[...] = res.astype(res_out_ref.dtype)

    # LayerNorm over the feature (lane) dim, computed in f32.
    mean = jnp.mean(res, axis=-1, keepdims=True)
    xc = res - mean
    var = jnp.mean(xc * xc, axis=-1, keepdims=True)
    inv = jax.lax.rsqrt(var + eps)
    y = xc * inv * w_ref[...].astype(jnp.float32) + b_ref[...].astype(jnp.float32)
    hs_out_ref[...] = y.astype(hs_out_ref.dtype)


def block_forward(hidden_states, residual, norm_weight, norm_bias, *,
                  eps=1e-5, residual_in_fp32=True, tile_m=256):
    """Forward of Block (minus the injected mixer).

    hidden_states: (B, L, D); residual: (B, L, D) or None;
    norm_weight/norm_bias: (D,).
    Returns (normed_hidden_states, new_residual), matching the PyTorch Block's
    add -> LayerNorm prenorm path with drop_path = Identity.
    """
    B, L, D = hidden_states.shape
    M = B * L
    has_residual = residual is not None

    hs2 = hidden_states.reshape(M, D)
    res2 = residual.reshape(M, D) if has_residual else None

    # Tile the token axis; sublane-aligned (multiple of 8), lane dim = full D.
    tm = min(tile_m, _round_up(M, 8))
    m_pad = _round_up(M, tm)
    if m_pad != M:
        hs2 = jnp.pad(hs2, ((0, m_pad - M), (0, 0)))
        if has_residual:
            res2 = jnp.pad(res2, ((0, m_pad - M), (0, 0)))

    w2 = norm_weight.reshape(1, D)
    b2 = norm_bias.reshape(1, D)

    res_dtype = jnp.float32 if residual_in_fp32 else hidden_states.dtype
    hs_out_dtype = norm_weight.dtype  # module: norm(residual.to(norm.weight.dtype))

    grid = (m_pad // tm,)
    row_spec = pl.BlockSpec((tm, D), lambda i: (i, 0))
    vec_spec = pl.BlockSpec((1, D), lambda i: (0, 0))  # weight/bias stay VMEM-resident

    in_specs = [row_spec] + ([row_spec] if has_residual else []) + [vec_spec, vec_spec]
    inputs = (hs2,) + ((res2,) if has_residual else ()) + (w2, b2)

    in_itemsize = jnp.dtype(hidden_states.dtype).itemsize
    cost = pl.CostEstimate(
        flops=9 * m_pad * D,
        transcendentals=m_pad,
        bytes_accessed=(1 + int(has_residual)) * m_pad * D * in_itemsize
                       + 2 * D * jnp.dtype(norm_weight.dtype).itemsize
                       + m_pad * D * (jnp.dtype(hs_out_dtype).itemsize
                                      + jnp.dtype(res_dtype).itemsize),
    )

    hs_out, res_out = pl.pallas_call(
        functools.partial(_fused_add_ln_kernel, eps=eps,
                          has_residual=has_residual),
        out_shape=(jax.ShapeDtypeStruct((m_pad, D), hs_out_dtype),
                   jax.ShapeDtypeStruct((m_pad, D), res_dtype)),
        grid_spec=pltpu.PrefetchScalarGridSpec(
            num_scalar_prefetch=0,
            grid=grid,
            in_specs=in_specs,
            out_specs=[pl.BlockSpec((tm, D), lambda i: (i, 0)),
                       pl.BlockSpec((tm, D), lambda i: (i, 0))],
        ),
        compiler_params=pltpu.CompilerParams(
            dimension_semantics=("parallel",)),
        cost_estimate=cost,
    )(*inputs)

    hs_out = hs_out[:M].reshape(B, L, D)
    res_out = res_out[:M].reshape(B, L, D)

    # TODO(synk): self.mixer (mixer_cls, i.e. the Mamba SSM mixer) is injected
    # into Block from outside and not defined by this module; apply it to
    # hs_out externally: hidden_states = mixer(hs_out).
    return hs_out, res_out


def _block_forward_ref(hidden_states, residual, w, b, eps, residual_in_fp32):
    res = hidden_states if residual is None else residual + hidden_states
    if residual_in_fp32:
        res = res.astype(jnp.float32)
    x = res.astype(w.dtype).astype(jnp.float32)
    mean = jnp.mean(x, axis=-1, keepdims=True)
    var = jnp.mean((x - mean) ** 2, axis=-1, keepdims=True)
    y = (x - mean) / jnp.sqrt(var + eps) * w + b
    return y.astype(w.dtype), res


if __name__ == "__main__":
    # Small shapes consistent with the module: batch=2, seq=8, hidden=128
    # (D kept a multiple of 128 for lane-dense stores, per the perf review).
    B, L, D = 2, 8, 128
    eps = 1e-5

    key = jax.random.PRNGKey(0)
    k1, k2, k3, k4 = jax.random.split(key, 4)
    hidden_states = jax.random.normal(k1, (B, L, D), dtype=jnp.float32)
    residual = jax.random.normal(k2, (B, L, D), dtype=jnp.float32)
    norm_weight = 1.0 + 0.02 * jax.random.normal(k3, (D,), dtype=jnp.float32)
    norm_bias = 0.02 * jax.random.normal(k4, (D,), dtype=jnp.float32)

    # Path 1: residual provided (every block after the first).
    hs_out, res_out = block_forward(hidden_states, residual, norm_weight,
                                    norm_bias, eps=eps, residual_in_fp32=True)
    hs_out, res_out = jax.block_until_ready((hs_out, res_out))
    hs_ref, res_ref = _block_forward_ref(hidden_states, residual, norm_weight,
                                         norm_bias, eps, True)
    assert hs_out.shape == (B, L, D) and res_out.shape == (B, L, D)
    assert res_out.dtype == jnp.float32
    assert jnp.allclose(hs_out, hs_ref, atol=1e-4, rtol=1e-4)
    assert jnp.allclose(res_out, res_ref, atol=1e-5, rtol=1e-5)

    # Path 2: first block (residual is None -> residual = hidden_states).
    hs_out0, res_out0 = block_forward(hidden_states, None, norm_weight,
                                      norm_bias, eps=eps, residual_in_fp32=True)
    hs_out0, res_out0 = jax.block_until_ready((hs_out0, res_out0))
    hs_ref0, res_ref0 = _block_forward_ref(hidden_states, None, norm_weight,
                                           norm_bias, eps, True)
    assert jnp.allclose(hs_out0, hs_ref0, atol=1e-4, rtol=1e-4)
    assert jnp.allclose(res_out0, res_ref0, atol=1e-5, rtol=1e-5)

    print("KERNEL_OK")
</pallas_src>

<mosaic_0001>
module attributes {stable_mosaic.version = 11 : i64} {
  func.func @_fused_add_ln_kernel(%arg0: i32, %arg1: memref<16x128xf32, #tpu.memory_space<vmem>>, %arg2: memref<16x128xf32, #tpu.memory_space<vmem>>, %arg3: memref<1x128xf32, #tpu.memory_space<vmem>>, %arg4: memref<1x128xf32, #tpu.memory_space<vmem>>, %arg5: memref<16x128xf32, #tpu.memory_space<vmem>>, %arg6: memref<16x128xf32, #tpu.memory_space<vmem>>) attributes {dimension_semantics = [#tpu.dimension_semantics<parallel>], iteration_bounds = array<i64: 1>, scalar_prefetch = 0 : i64, scratch_operands = 0 : i64, tpu.core_type = #tpu.core_type<tc>, window_params = [{transform_indices = @transform_0, window_bounds = array<i64: 16, 128>}, {transform_indices = @transform_1, window_bounds = array<i64: 16, 128>}, {pipeline_mode = #tpu.pipeline_mode<synchronous>, transform_indices = @transform_2, window_bounds = array<i64: 1, 128>}, {pipeline_mode = #tpu.pipeline_mode<synchronous>, transform_indices = @transform_3, window_bounds = array<i64: 1, 128>}, {transform_indices = @transform_4, window_bounds = array<i64: 16, 128>}, {transform_indices = @transform_5, window_bounds = array<i64: 16, 128>}]} {
    %c0 = arith.constant 0 : index
    %c0_0 = arith.constant 0 : index
    %0 = vector.load %arg1[%c0, %c0_0] : memref<16x128xf32, #tpu.memory_space<vmem>>, vector<16x128xf32>
    %c0_1 = arith.constant 0 : index
    %c0_2 = arith.constant 0 : index
    %1 = vector.load %arg2[%c0_1, %c0_2] : memref<16x128xf32, #tpu.memory_space<vmem>>, vector<16x128xf32>
    %2 = arith.addf %1, %0 : vector<16x128xf32>
    %c0_3 = arith.constant 0 : index
    %c0_4 = arith.constant 0 : index
    %3 = vector.load %arg6[%c0_3, %c0_4] : memref<16x128xf32, #tpu.memory_space<vmem>>, vector<16x128xf32>
    tpu.vector_store %arg6[%c0_3, %c0_4], %2 {strides = array<i32>} : memref<16x128xf32, #tpu.memory_space<vmem>>, vector<16x128xf32>,
    %cst = arith.constant dense<0.000000e+00> : vector<16xf32>
    %4 = vector.multi_reduction <add>, %2, %cst [1] : vector<16x128xf32> to vector<16xf32>
    %5 = vector.shape_cast %4 : vector<16xf32> to vector<16x1xf32>
    %cst_5 = arith.constant 1.280000e+02 : f32
    %6 = vector.broadcast %cst_5 : f32 to vector<16x1xf32>
    %7 = arith.divf %5, %6 : vector<16x1xf32>
    %8 = vector.broadcast %7 : vector<16x1xf32> to vector<16x128xf32>
    %9 = arith.subf %2, %8 : vector<16x128xf32>
    %10 = arith.mulf %9, %9 : vector<16x128xf32>
    %cst_6 = arith.constant dense<0.000000e+00> : vector<16xf32>
    %11 = vector.multi_reduction <add>, %10, %cst_6 [1] : vector<16x128xf32> to vector<16xf32>
    %12 = vector.shape_cast %11 : vector<16xf32> to vector<16x1xf32>
    %cst_7 = arith.constant 1.280000e+02 : f32
    %13 = vector.broadcast %cst_7 : f32 to vector<16x1xf32>
    %14 = arith.divf %12, %13 : vector<16x1xf32>
    %cst_8 = arith.constant 9.99999974E-6 : f32
    %15 = vector.broadcast %cst_8 : f32 to vector<16x1xf32>
    %16 = arith.addf %14, %15 : vector<16x1xf32>
    %17 = math.rsqrt %16 : vector<16x1xf32>
    %18 = vector.broadcast %17 : vector<16x1xf32> to vector<16x128xf32>
    %19 = arith.mulf %9, %18 : vector<16x128xf32>
    %c0_9 = arith.constant 0 : index
    %c0_10 = arith.constant 0 : index
    %20 = vector.load %arg3[%c0_9, %c0_10] : memref<1x128xf32, #tpu.memory_space<vmem>>, vector<1x128xf32>
    %21 = vector.broadcast %20 : vector<1x128xf32> to vector<16x128xf32>
    %22 = arith.mulf %19, %21 : vector<16x128xf32>
    %c0_11 = arith.constant 0 : index
    %c0_12 = arith.constant 0 : index
    %23 = vector.load %arg4[%c0_11, %c0_12] : memref<1x128xf32, #tpu.memory_space<vmem>>, vector<1x128xf32>
    %24 = vector.broadcast %23 : vector<1x128xf32> to vector<16x128xf32>
    %25 = arith.addf %22, %24 : vector<16x128xf32>
    %c0_13 = arith.constant 0 : index
    %c0_14 = arith.constant 0 : index
    %26 = vector.load %arg5[%c0_13, %c0_14] : memref<16x128xf32, #tpu.memory_space<vmem>>, vector<16x128xf32>
    tpu.vector_store %arg5[%c0_13, %c0_14], %25 {strides = array<i32>} : memref<16x128xf32, #tpu.memory_space<vmem>>, vector<16x128xf32>,
    return
  }
  func.func @transform_0(%arg0: i32) -> (i32, i32) {
    %c0_i32 = arith.constant 0 : i32
    %c0_i32_0 = arith.constant 0 : i32
    return %arg0, %c0_i32 : i32, i32
  }
  func.func @transform_1(%arg0: i32) -> (i32, i32) {
    %c0_i32 = arith.constant 0 : i32
    %c0_i32_0 = arith.constant 0 : i32
    return %arg0, %c0_i32 : i32, i32
  }
  func.func @transform_2(%arg0: i32) -> (i32, i32) {
    %c0_i32 = arith.constant 0 : i32
    %c0_i32_0 = arith.constant 0 : i32
    %c0_i32_1 = arith.constant 0 : i32
    return %c0_i32, %c0_i32_0 : i32, i32
  }
  func.func @transform_3(%arg0: i32) -> (i32, i32) {
    %c0_i32 = arith.constant 0 : i32
    %c0_i32_0 = arith.constant 0 : i32
    %c0_i32_1 = arith.constant 0 : i32
    return %c0_i32, %c0_i32_0 : i32, i32
  }
  func.func @transform_4(%arg0: i32) -> (i32, i32) {
    %c0_i32 = arith.constant 0 : i32
    %c0_i32_0 = arith.constant 0 : i32
    return %arg0, %c0_i32 : i32, i32
  }
  func.func @transform_5(%arg0: i32) -> (i32, i32) {
    %c0_i32 = arith.constant 0 : i32
    %c0_i32_0 = arith.constant 0 : i32
    return %arg0, %c0_i32 : i32, i32
  }
}

</mosaic_0001>

<llo_original>
// kernel: tpu_custom_call.1
$region0: #{tpu_custom_call.1}
  #allocation0 [shape = 'u32[]', space=smem, size = 0x4, offset = 0x4, fixed_abs, tag = 'smem constant byte address 0x4 - core index']
  #allocation1 [shape = 'u32[144,128]{1,0:T(1,128)}', space=vmem, size = 0x12000, scoped, tag = 'internal scratch']
  %s0 = inlined_call_operand.hbm [shape: f32[16,128], index: 0, kind: input, shape index: {}]
  %s1 = inlined_call_operand.hbm [shape: f32[16,128], index: 1, kind: input, shape index: {}]
  %s2 = inlined_call_operand.vmem [shape: f32[1,128], index: 2, kind: input, shape index: {}]
  %s3 = inlined_call_operand.vmem [shape: f32[1,128], index: 3, kind: input, shape index: {}]
  %s4 = inlined_call_operand.hbm [shape: f32[16,128], index: 4, kind: output, shape index: {0}]
  %s5 = inlined_call_operand.hbm [shape: f32[16,128], index: 5, kind: output, shape index: {1}]
  %6 = xla_tuple %s4, %s5
  %s7 = sld [smem:[#allocation0]]
  $region42: #{tpu_custom_call.1} parent=0
    _
  %s9 = ssub.s32 1, %s7
  %s10 = scalar_select 0, %s9, %s7
  $region1: #{tpu_custom_call.1} parent=0
    #allocation2 [shape = 'u8[8192]{0}', space=vmem, size = 0x2000, scoped, tag = 'input window, operand 0, single buffered']
    #allocation3 [shape = 's32[1]{0}', space=sflag, size = 0x4, scoped, tag = 'scoped memory for tpu_custom_call.1']
    #allocation4 [shape = 's32[1]{0}', space=sflag, size = 0x4, scoped, tag = 'scoped memory for tpu_custom_call.1']
    #allocation5 [shape = 'u8[8192]{0}', space=vmem, size = 0x2000, scoped, tag = 'input window, operand 1, single buffered']
    #allocation6 [shape = 's32[1]{0}', space=sflag, size = 0x4, scoped, tag = 'scoped memory for tpu_custom_call.1']
    #allocation7 [shape = 'u8[8192]{0}', space=vmem, size = 0x2000, scoped, tag = 'output window, operand 0, single buffered']
    #allocation8 [shape = 'u8[8192]{0}', space=vmem, size = 0x2000, scoped, tag = 'output window, operand 1, single buffered']
    #allocation9 [shape = 's32[1]{0}', space=sflag, size = 0x4, scoped, tag = 'scoped memory for tpu_custom_call.1']
    %11 = vsyncpa [#allocation3], 0
    %12 = vsyncpa [#allocation6], 0
    %13 = vsyncpa [#allocation4], 0
    %14 = vsyncpa [#allocation9], 0
    // Predicated region
    $region2: #{tpu_custom_call.1} parent=1 // pred_check
      _
    $region3: #{tpu_custom_call.1} parent=1 // pred_check_branch
      %16 = sbr.rel (0) target = $region5
    $region4: #{tpu_custom_call.1} parent=1 // pred_region
      %s18 = ssub.s32 256, 256
      %19 = vsyncadd [#allocation3], %s18
      %s20 = sshll.u32 [#allocation2], 4
      %s21 = int_to_ptr.vmem [resolvable:$true] %s20
      %26 = dma.hbm_to_vmem [thread:$0]  %s0, 256, %s21, [#allocation3], 128, 128, 8
    $region5: #{tpu_custom_call.1} parent=1 // pred_fallthru
      _
    // Predicated region
    $region6: #{tpu_custom_call.1} parent=1 // pred_check
      _
    $region7: #{tpu_custom_call.1} parent=1 // pred_check_branch
      %28 = sbr.rel (0) target = $region9
    $region8: #{tpu_custom_call.1} parent=1 // pred_region
      %s30 = ssub.s32 256, 256
      %31 = vsyncadd [#allocation6], %s30
      %s32 = sshll.u32 [#allocation5], 4
      %s33 = int_to_ptr.vmem [resolvable:$true] %s32
      %38 = dma.hbm_to_vmem [thread:$0]  %s1, 256, %s33, [#allocation6], 128, 128, 8
    $region9: #{tpu_custom_call.1} parent=1 // pred_fallthru
      _
    // Predicated region
    $region10: #{tpu_custom_call.1} parent=1 // pred_check
      _
    $region11: #{tpu_custom_call.1} parent=1 // pred_check_branch
      %40 = sbr.rel (0) target = $region13
    $region12: #{tpu_custom_call.1} parent=1 // pred_region
      _
    $region13: #{tpu_custom_call.1} parent=1 // pred_fallthru
      _
    // Predicated region
    $region14: #{tpu_custom_call.1} parent=1 // pred_check
      _
    $region15: #{tpu_custom_call.1} parent=1 // pred_check_branch
      %42 = sbr.rel (0) target = $region17
    $region16: #{tpu_custom_call.1} parent=1 // pred_region
      _
    $region17: #{tpu_custom_call.1} parent=1 // pred_fallthru
      _
    // Predicated region
    $region18: #{tpu_custom_call.1} parent=1 // pred_check
      _
    $region19: #{tpu_custom_call.1} parent=1 // pred_check_branch
      %44 = sbr.rel (0) target = $region21
    $region20: #{tpu_custom_call.1} parent=1 // pred_region
      %45 = dma.done [#allocation3], 256
    $region21: #{tpu_custom_call.1} parent=1 // pred_fallthru
      _
    // Predicated region
    $region22: #{tpu_custom_call.1} parent=1 // pred_check
      _
    $region23: #{tpu_custom_call.1} parent=1 // pred_check_branch
      %47 = sbr.rel (0) target = $region25
    $region24: #{tpu_custom_call.1} parent=1 // pred_region
      %48 = dma.done [#allocation6], 256
    $region25: #{tpu_custom_call.1} parent=1 // pred_fallthru
      _
    %v49 = vld [vmem:[#allocation2] sm:$0xff]
    %v50 = vld [vmem:[#allocation2 + $0x8] sm:$0xff]
    %v51 = vld [vmem:[#allocation5] sm:$0xff]
    %v52 = vld [vmem:[#allocation5 + $0x8] sm:$0xff]
    %v53 = vadd.f32 %v51, %v49
    %v54 = vadd.f32 %v52, %v50
    %55 = vst [vmem:[#allocation8] sm:$0xff] %v53
    %56 = vst [vmem:[#allocation8 + $0x8] sm:$0xff] %v54
    %57 = vadd.xlane.f32.xlu0 %v53
    %v58 = vpop.xlane.xlu0 %57
    %59 = vadd.xlane.f32.xlu0 %v54
    %v60 = vpop.xlane.xlu0 %59
    %v61 = vrcp.pop 128.0
    %v62 = vmul.f32 %v58, %v61
    %v63 = vmul.f32 %v60, %v61
    %v64 = vsub.f32 %v53, %v62
    %v65 = vsub.f32 %v54, %v63
    %v66 = vmul.f32 %v64, %v64
    %v67 = vmul.f32 %v65, %v65
    %68 = vadd.xlane.f32.xlu0 %v66
    %v69 = vpop.xlane.xlu0 %68
    %70 = vadd.xlane.f32.xlu0 %v67
    %v71 = vpop.xlane.xlu0 %70
    %v72 = vmul.f32 %v69, %v61
    %v73 = vmul.f32 %v71, %v61
    %v74 = vadd.f32 %v72, 1e-05
    %v75 = vadd.f32 %v73, 1e-05
    %v76 = vrsqrt.pop %v74
    %v77 = vrsqrt.pop %v75
    %v78 = vmul.f32 %v64, %v76
    %v79 = vmul.f32 %v65, %v77
    %v80 = vld [vmem:[%s2] sm:$0x1]
    %v82 = vlaneseq
    %v83 = vshrl.u32 %v82, 7
    %v84 = vsub.s32 0, %v83
    %v85 = vrot.slane %v80, %v84
    %v87 = vmul.f32 %v78, %v85
    %v88 = vmul.f32 %v79, %v85
    %v89 = vld [vmem:[%s3] sm:$0x1]
    %v91 = vlaneseq
    %v92 = vshrl.u32 %v91, 7
    %v93 = vsub.s32 0, %v92
    %v94 = vrot.slane %v89, %v93
    %v96 = vadd.f32 %v87, %v94
    %v97 = vadd.f32 %v88, %v94
    %98 = vst [vmem:[#allocation7] sm:$0xff] %v96
    %99 = vst [vmem:[#allocation7 + $0x8] sm:$0xff] %v97
    // Predicated region
    $region26: #{tpu_custom_call.1} parent=1 // pred_check
      _
    $region27: #{tpu_custom_call.1} parent=1 // pred_check_branch
      %101 = sbr.rel (0) target = $region29
    $region28: #{tpu_custom_call.1} parent=1 // pred_region
      %s103 = ssub.s32 256, 256
      %104 = vsyncadd [#allocation4], %s103
      %s105 = sshll.u32 [#allocation7], 4
      %s106 = int_to_ptr.vmem [resolvable:$true] %s105
      %111 = dma.vmem_to_hbm [thread:$0]  %s106, 256, %s4, [#allocation4], 128, 128, 8
    $region29: #{tpu_custom_call.1} parent=1 // pred_fallthru
      _
    // Predicated region
    $region30: #{tpu_custom_call.1} parent=1 // pred_check
      _
    $region31: #{tpu_custom_call.1} parent=1 // pred_check_branch
      %113 = sbr.rel (0) target = $region33
    $region32: #{tpu_custom_call.1} parent=1 // pred_region
      %s115 = ssub.s32 256, 256
      %116 = vsyncadd [#allocation9], %s115
      %s117 = sshll.u32 [#allocation8], 4
      %s118 = int_to_ptr.vmem [resolvable:$true] %s117
      %123 = dma.vmem_to_hbm [thread:$0]  %s118, 256, %s5, [#allocation9], 128, 128, 8
    $region33: #{tpu_custom_call.1} parent=1 // pred_fallthru
      _
    // Predicated region
    $region34: #{tpu_custom_call.1} parent=1 // pred_check
      _
    $region35: #{tpu_custom_call.1} parent=1 // pred_check_branch
      %125 = sbr.rel (0) target = $region37
    $region36: #{tpu_custom_call.1} parent=1 // pred_region
      %126 = dma.done [#allocation4], 256
    $region37: #{tpu_custom_call.1} parent=1 // pred_fallthru
      _
    // Predicated region
    $region38: #{tpu_custom_call.1} parent=1 // pred_check
      _
    $region39: #{tpu_custom_call.1} parent=1 // pred_check_branch
      %128 = sbr.rel (0) target = $region41
    $region40: #{tpu_custom_call.1} parent=1 // pred_region
      %129 = dma.done [#allocation9], 256
    $region41: #{tpu_custom_call.1} parent=1 // pred_fallthru
      _
    %130 = vsyncpa [#allocation3], 1
    %131 = vsyncpa [#allocation6], 1
    %132 = vsyncpa [#allocation4], 1
    %133 = vsyncpa [#allocation9], 1

</llo_original>
